<compile_context>
chip_gen: v7x
topology: tpu7x:2x2x1
jax: 0.10.0
libtpu: 0.0.40
codegen_flags: <defaults>
</compile_context>

<pallas_src>
import functools

import jax
import jax.numpy as jnp
from jax.experimental import pallas as pl
from jax.experimental.pallas import tpu as pltpu


def _round_up(x, m):
    return ((x + m - 1) // m) * m


def _critic_kernel(x_ref, w1_ref, b1_ref, w2_ref, b2_ref, w3_ref, b3_ref, o_ref):
    # x_ref: [TB, Din] f32; w1: [Din, H] bf16; w2: [H, H] bf16; w3: [1, H] f32.
    # Cast activations to the MXU compute dtype in-vreg (cheap VPU op) instead
    # of a separate wrapper-side XLA cast pass over x.
    x = x_ref[...].astype(w1_ref.dtype)

    # Layer 1: MXU matmul, f32 accumulation; bias + ReLU on the VPU.
    h1 = jnp.dot(x, w1_ref[...], preferred_element_type=jnp.float32) + b1_ref[...]
    h1 = jnp.maximum(h1, 0.0)                                      # [TB, H] f32

    # Layer 2: MXU matmul (activation cast back to the weight dtype).
    h2 = jnp.dot(h1.astype(w2_ref.dtype), w2_ref[...],
                 preferred_element_type=jnp.float32) + b2_ref[...]
    h2 = jnp.maximum(h2, 0.0)                                      # [TB, H] f32

    # Layer 3 (out_features == 1): VPU multiply + XLU lane reduce instead of an
    # N=1 MXU matmul (avoids an under-filled MXU push + result-FIFO drain).
    q = jnp.sum(h2 * w3_ref[...], axis=-1, keepdims=True) + b3_ref[...]  # [TB, 1]

    # Narrow (TB, 1) store: 4 B/row of HBM writeback (vs 512 B/row for the old
    # 128-lane broadcast slab).  Partial trailing blocks are masked by Pallas.
    o_ref[...] = q.astype(o_ref.dtype)


def _choose_batch_tile(batch, block_b):
    """Pick the batch tile.

    * tiny batches: one grid step with block == full array (always legal);
    * otherwise aim for >= 2 grid steps so the "parallel" batch axis can shard
      across v7x's two TensorCores, rounded to 16 sublanes (bf16 vreg packs
      [16, 128]) and capped at block_b so per-step overhead amortizes without
      blowing up per-step VMEM.
    """
    if batch <= 16:
        return batch
    tb = _round_up(pl.cdiv(batch, 2), 16)
    return min(tb, block_b)


@functools.partial(jax.jit, static_argnames=("block_b",))
def critic_forward(x, prepared, *, block_b=1024):
    """x: [B, critic_input_dim] float32; prepared: output of prepare_critic_params."""
    batch, din = x.shape
    w1, b1 = prepared["w1"], prepared["b1"]
    w2, b2 = prepared["w2"], prepared["b2"]
    w3_row, b3 = prepared["w3_row"], prepared["b3"]

    tb = _choose_batch_tile(batch, block_b)
    grid = (pl.cdiv(batch, tb),)   # no wrapper-side padding pass over x

    # Weights/biases: full block, constant block index -> DMA'd once and kept
    # VMEM-resident across all grid steps.
    def resident(a):
        return pl.BlockSpec(a.shape, lambda i: (0,) * a.ndim)

    return pl.pallas_call(
        _critic_kernel,
        out_shape=jax.ShapeDtypeStruct((batch, 1), jnp.float32),
        grid=grid,
        in_specs=[
            # Activation stream.  (Add pipeline_mode=pl.Buffered(3) here only
            # if profiling shows exposed DMA at small tiles.)
            pl.BlockSpec((tb, din), lambda i: (i, 0)),
            resident(w1), resident(b1),
            resident(w2), resident(b2),
            resident(w3_row), resident(b3),
        ],
        out_specs=pl.BlockSpec((tb, 1), lambda i: (i, 0)),
        compiler_params=pltpu.CompilerParams(
            dimension_semantics=("parallel",),   # batch tiles shard across TCs (v7x)
            vmem_limit_bytes=16 << 20,           # real footprint is a few MiB
        ),
    )(x, w1, b1, w2, b2, w3_row, b3)


def prepare_critic_params(params, use_bf16=True):
    """One-time cast/reshape of the parameters into kernel-ready form.

    Doing this once (instead of per forward call) removes six tiny XLA
    cast/transpose dispatches from the latency-critical small-batch path.
    """
    cdt = jnp.bfloat16 if use_bf16 else jnp.float32
    hidden = params["w1"].shape[1]
    return {
        "w1": params["w1"].astype(cdt),                          # [Din, H]
        "b1": params["b1"].astype(jnp.float32).reshape(1, hidden),
        "w2": params["w2"].astype(cdt),                          # [H, H]
        "b2": params["b2"].astype(jnp.float32).reshape(1, hidden),
        # Third layer stays f32 (it runs on the VPU, not the MXU): store [1, H].
        "w3_row": params["w3"].astype(jnp.float32).T.reshape(1, hidden),
        "b3": params["b3"].astype(jnp.float32).reshape(1, 1),
    }


def init_critic_params(key, critic_input_dim, hidden_dim):
    """Deterministic init mimicking nn.Linear.reset_parameters:
    U(-1/sqrt(fan_in), 1/sqrt(fan_in)) for weights and biases."""
    keys = jax.random.split(key, 6)

    def linear(kw, kb, fan_in, fan_out):
        bound = 1.0 / jnp.sqrt(jnp.float32(fan_in))
        # stored as [in, out] so the kernel computes x @ W (== PyTorch x @ W.T)
        w = jax.random.uniform(kw, (fan_in, fan_out), jnp.float32, -bound, bound)
        b = jax.random.uniform(kb, (1, fan_out), jnp.float32, -bound, bound)
        return w, b

    w1, b1 = linear(keys[0], keys[1], critic_input_dim, hidden_dim)
    w2, b2 = linear(keys[2], keys[3], hidden_dim, hidden_dim)
    w3, b3 = linear(keys[4], keys[5], hidden_dim, 1)
    return {"w1": w1, "b1": b1, "w2": w2, "b2": b2, "w3": w3, "b3": b3}


def _reference(x, params, use_bf16):
    """Plain-JAX reference with the same operand dtypes as the kernel."""
    cdt = jnp.bfloat16 if use_bf16 else jnp.float32
    h1 = jnp.maximum(
        jnp.dot(x.astype(cdt), params["w1"].astype(cdt),
                preferred_element_type=jnp.float32) + params["b1"], 0.0)
    h2 = jnp.maximum(
        jnp.dot(h1.astype(cdt), params["w2"].astype(cdt),
                preferred_element_type=jnp.float32) + params["b2"], 0.0)
    return jnp.dot(h2, params["w3"]) + params["b3"]


if __name__ == "__main__":
    key = jax.random.PRNGKey(0)
    k_x, k_x2, k_p = jax.random.split(key, 3)

    batch = 8
    critic_input_dim = 48   # e.g. concat of all agents' obs + actions
    hidden_dim = 32

    params = init_critic_params(k_p, critic_input_dim, hidden_dim)
    prepared = prepare_critic_params(params, use_bf16=True)   # one-time cast/reshape

    # --- small batch (single grid step, block == full array) ---
    x = jax.random.normal(k_x, (batch, critic_input_dim), jnp.float32)
    q = jax.block_until_ready(critic_forward(x, prepared))
    assert q.shape == (batch, 1)

    q_ref = _reference(x, params, use_bf16=True)     # same-dtype reference
    q_f32 = _reference(x, params, use_bf16=False)    # full-precision reference
    assert jnp.allclose(q, q_ref, atol=2e-3, rtol=2e-3)
    assert jnp.allclose(q, q_f32, atol=5e-2, rtol=5e-2)

    # --- ragged batch (2 grid steps, masked partial trailing block, no pad) ---
    batch2 = 300
    x2 = jax.random.normal(k_x2, (batch2, critic_input_dim), jnp.float32)
    q2 = jax.block_until_ready(critic_forward(x2, prepared))
    assert q2.shape == (batch2, 1)
    q2_ref = _reference(x2, params, use_bf16=True)
    assert jnp.allclose(q2, q2_ref, atol=2e-3, rtol=2e-3)

    print("KERNEL_OK")
</pallas_src>

<mosaic_0001>
module attributes {stable_mosaic.version = 11 : i64} {
  func.func @_critic_kernel(%arg0: i32, %arg1: memref<8x48xf32, #tpu.memory_space<vmem>>, %arg2: memref<48x32xbf16, #tpu.memory_space<vmem>>, %arg3: memref<1x32xf32, #tpu.memory_space<vmem>>, %arg4: memref<32x32xbf16, #tpu.memory_space<vmem>>, %arg5: memref<1x32xf32, #tpu.memory_space<vmem>>, %arg6: memref<1x32xf32, #tpu.memory_space<vmem>>, %arg7: memref<1x1xf32, #tpu.memory_space<vmem>>, %arg8: memref<8x1xf32, #tpu.memory_space<vmem>>) attributes {dimension_semantics = [#tpu.dimension_semantics<parallel>], iteration_bounds = array<i64: 1>, scalar_prefetch = 0 : i64, scratch_operands = 0 : i64, tpu.core_type = #tpu.core_type<tc>, window_params = [{transform_indices = @transform_0, window_bounds = array<i64: 8, 48>}, {pipeline_mode = #tpu.pipeline_mode<synchronous>, transform_indices = @transform_1, window_bounds = array<i64: 48, 32>}, {pipeline_mode = #tpu.pipeline_mode<synchronous>, transform_indices = @transform_2, window_bounds = array<i64: 1, 32>}, {pipeline_mode = #tpu.pipeline_mode<synchronous>, transform_indices = @transform_3, window_bounds = array<i64: 32, 32>}, {pipeline_mode = #tpu.pipeline_mode<synchronous>, transform_indices = @transform_4, window_bounds = array<i64: 1, 32>}, {pipeline_mode = #tpu.pipeline_mode<synchronous>, transform_indices = @transform_5, window_bounds = array<i64: 1, 32>}, {pipeline_mode = #tpu.pipeline_mode<synchronous>, transform_indices = @transform_6, window_bounds = array<i64: 1, 1>}, {transform_indices = @transform_7, window_bounds = array<i64: 8, 1>}]} {
    %c0 = arith.constant 0 : index
    %c0_0 = arith.constant 0 : index
    %0 = vector.load %arg1[%c0, %c0_0] : memref<8x48xf32, #tpu.memory_space<vmem>>, vector<8x48xf32>
    %1 = arith.truncf %0 : vector<8x48xf32> to vector<8x48xbf16>
    %c0_1 = arith.constant 0 : index
    %c0_2 = arith.constant 0 : index
    %2 = vector.load %arg2[%c0_1, %c0_2] : memref<48x32xbf16, #tpu.memory_space<vmem>>, vector<48x32xbf16>
    %cst = arith.constant dense<0.000000e+00> : vector<8x32xf32>
    %3 = tpu.matmul %1, %2, %cst {dimension_numbers = #tpu.dot_dimension_numbers<[1], [0], [0], [1], [0, 0, 1, 1], [], []>} : vector<8x48xbf16>, vector<48x32xbf16>, vector<8x32xf32> -> vector<8x32xf32>
    %c0_3 = arith.constant 0 : index
    %c0_4 = arith.constant 0 : index
    %4 = vector.load %arg3[%c0_3, %c0_4] : memref<1x32xf32, #tpu.memory_space<vmem>>, vector<1x32xf32>
    %5 = vector.broadcast %4 : vector<1x32xf32> to vector<8x32xf32>
    %6 = arith.addf %3, %5 : vector<8x32xf32>
    %cst_5 = arith.constant 0.000000e+00 : f32
    %7 = vector.broadcast %cst_5 : f32 to vector<8x32xf32>
    %8 = arith.maximumf %6, %7 : vector<8x32xf32>
    %9 = arith.truncf %8 : vector<8x32xf32> to vector<8x32xbf16>
    %c0_6 = arith.constant 0 : index
    %c0_7 = arith.constant 0 : index
    %10 = vector.load %arg4[%c0_6, %c0_7] : memref<32x32xbf16, #tpu.memory_space<vmem>>, vector<32x32xbf16>
    %cst_8 = arith.constant dense<0.000000e+00> : vector<8x32xf32>
    %11 = tpu.matmul %9, %10, %cst_8 {dimension_numbers = #tpu.dot_dimension_numbers<[1], [0], [0], [1], [0, 0, 1, 1], [], []>} : vector<8x32xbf16>, vector<32x32xbf16>, vector<8x32xf32> -> vector<8x32xf32>
    %c0_9 = arith.constant 0 : index
    %c0_10 = arith.constant 0 : index
    %12 = vector.load %arg5[%c0_9, %c0_10] : memref<1x32xf32, #tpu.memory_space<vmem>>, vector<1x32xf32>
    %13 = vector.broadcast %12 : vector<1x32xf32> to vector<8x32xf32>
    %14 = arith.addf %11, %13 : vector<8x32xf32>
    %cst_11 = arith.constant 0.000000e+00 : f32
    %15 = vector.broadcast %cst_11 : f32 to vector<8x32xf32>
    %16 = arith.maximumf %14, %15 : vector<8x32xf32>
    %c0_12 = arith.constant 0 : index
    %c0_13 = arith.constant 0 : index
    %17 = vector.load %arg6[%c0_12, %c0_13] : memref<1x32xf32, #tpu.memory_space<vmem>>, vector<1x32xf32>
    %18 = vector.broadcast %17 : vector<1x32xf32> to vector<8x32xf32>
    %19 = arith.mulf %16, %18 : vector<8x32xf32>
    %cst_14 = arith.constant dense<0.000000e+00> : vector<8xf32>
    %20 = vector.multi_reduction <add>, %19, %cst_14 [1] : vector<8x32xf32> to vector<8xf32>
    %21 = vector.shape_cast %20 : vector<8xf32> to vector<8x1xf32>
    %c0_15 = arith.constant 0 : index
    %c0_16 = arith.constant 0 : index
    %22 = vector.load %arg7[%c0_15, %c0_16] : memref<1x1xf32, #tpu.memory_space<vmem>>, vector<1x1xf32>
    %23 = vector.broadcast %22 : vector<1x1xf32> to vector<8x1xf32>
    %24 = arith.addf %21, %23 : vector<8x1xf32>
    %c0_17 = arith.constant 0 : index
    %c0_18 = arith.constant 0 : index
    %25 = vector.load %arg8[%c0_17, %c0_18] : memref<8x1xf32, #tpu.memory_space<vmem>>, vector<8x1xf32>
    tpu.vector_store %arg8[%c0_17, %c0_18], %24 {strides = array<i32>} : memref<8x1xf32, #tpu.memory_space<vmem>>, vector<8x1xf32>,
    return
  }
  func.func @transform_0(%arg0: i32) -> (i32, i32) {
    %c0_i32 = arith.constant 0 : i32
    %c0_i32_0 = arith.constant 0 : i32
    return %arg0, %c0_i32 : i32, i32
  }
  func.func @transform_1(%arg0: i32) -> (i32, i32) {
    %c0_i32 = arith.constant 0 : i32
    %c0_i32_0 = arith.constant 0 : i32
    %c0_i32_1 = arith.constant 0 : i32
    return %c0_i32, %c0_i32_0 : i32, i32
  }
  func.func @transform_2(%arg0: i32) -> (i32, i32) {
    %c0_i32 = arith.constant 0 : i32
    %c0_i32_0 = arith.constant 0 : i32
    %c0_i32_1 = arith.constant 0 : i32
    return %c0_i32, %c0_i32_0 : i32, i32
  }
  func.func @transform_3(%arg0: i32) -> (i32, i32) {
    %c0_i32 = arith.constant 0 : i32
    %c0_i32_0 = arith.constant 0 : i32
    %c0_i32_1 = arith.constant 0 : i32
    return %c0_i32, %c0_i32_0 : i32, i32
  }
  func.func @transform_4(%arg0: i32) -> (i32, i32) {
    %c0_i32 = arith.constant 0 : i32
    %c0_i32_0 = arith.constant 0 : i32
    %c0_i32_1 = arith.constant 0 : i32
    return %c0_i32, %c0_i32_0 : i32, i32
  }
  func.func @transform_5(%arg0: i32) -> (i32, i32) {
    %c0_i32 = arith.constant 0 : i32
    %c0_i32_0 = arith.constant 0 : i32
    %c0_i32_1 = arith.constant 0 : i32
    return %c0_i32, %c0_i32_0 : i32, i32
  }
  func.func @transform_6(%arg0: i32) -> (i32, i32) {
    %c0_i32 = arith.constant 0 : i32
    %c0_i32_0 = arith.constant 0 : i32
    %c0_i32_1 = arith.constant 0 : i32
    return %c0_i32, %c0_i32_0 : i32, i32
  }
  func.func @transform_7(%arg0: i32) -> (i32, i32) {
    %c0_i32 = arith.constant 0 : i32
    %c0_i32_0 = arith.constant 0 : i32
    return %arg0, %c0_i32 : i32, i32
  }
}

</mosaic_0001>

<llo_original>
// kernel: critic_forward.1
$region0: #{critic_forward.1}
  #allocation0 [shape = 'u32[]', space=smem, size = 0x4, offset = 0x4, fixed_abs, tag = 'smem constant byte address 0x4 - core index']
  #allocation1 [shape = 'u32[144,128]{1,0:T(1,128)}', space=vmem, size = 0x12000, scoped, tag = 'internal scratch']
  #allocation2 [shape = 'f32[1,1]{1,0:T(1,128)S(1)}', space=vmem, size = 0x200, scoped, tag = 'scoped memory for critic_forward.1']
  %s0 = inlined_call_operand.vmem [shape: f32[8,48], index: 0, kind: input, shape index: {}]
  %s1 = inlined_call_operand.vmem [shape: bf16[48,32], index: 1, kind: input, shape index: {}]
  %s2 = inlined_call_operand.vmem [shape: f32[1,32], index: 2, kind: input, shape index: {}]
  %s3 = inlined_call_operand.vmem [shape: bf16[32,32], index: 3, kind: input, shape index: {}]
  %s4 = inlined_call_operand.vmem [shape: f32[1,32], index: 4, kind: input, shape index: {}]
  %s5 = inlined_call_operand.vmem [shape: f32[1,32], index: 5, kind: input, shape index: {}]
  %s6 = inlined_call_operand.<no memory space> [shape: f32[1,1], index: 6, kind: input, shape index: {}]
  %s7 = inlined_call_operand.vmem [shape: f32[8,1], index: 7, kind: output, shape index: {}]
  %s8 = sld [smem:[#allocation0]]
  $region38: #{critic_forward.1} parent=0
    _
  %s10 = ssub.s32 1, %s8
  %s11 = scalar_select 0, %s10, %s8
  %v12 = vstv %s6
  %13 = vst [vmem:[#allocation2] sm:$0x1] %v12
  // Predicated region
  $region2: #{critic_forward.1} parent=0 // pred_check
    _
  $region3: #{critic_forward.1} parent=0 // pred_check_branch
    %15 = sbr.rel (0) target = $region5
  $region4: #{critic_forward.1} parent=0 // pred_region
    _
  $region5: #{critic_forward.1} parent=0 // pred_fallthru
    _
  // Predicated region
  $region6: #{critic_forward.1} parent=0 // pred_check
    _
  $region7: #{critic_forward.1} parent=0 // pred_check_branch
    %17 = sbr.rel (0) target = $region9
  $region8: #{critic_forward.1} parent=0 // pred_region
    _
  $region9: #{critic_forward.1} parent=0 // pred_fallthru
    _
  // Predicated region
  $region10: #{critic_forward.1} parent=0 // pred_check
    _
  $region11: #{critic_forward.1} parent=0 // pred_check_branch
    %19 = sbr.rel (0) target = $region13
  $region12: #{critic_forward.1} parent=0 // pred_region
    _
  $region13: #{critic_forward.1} parent=0 // pred_fallthru
    _
  // Predicated region
  $region14: #{critic_forward.1} parent=0 // pred_check
    _
  $region15: #{critic_forward.1} parent=0 // pred_check_branch
    %21 = sbr.rel (0) target = $region17
  $region16: #{critic_forward.1} parent=0 // pred_region
    _
  $region17: #{critic_forward.1} parent=0 // pred_fallthru
    _
  // Predicated region
  $region18: #{critic_forward.1} parent=0 // pred_check
    _
  $region19: #{critic_forward.1} parent=0 // pred_check_branch
    %23 = sbr.rel (0) target = $region21
  $region20: #{critic_forward.1} parent=0 // pred_region
    _
  $region21: #{critic_forward.1} parent=0 // pred_fallthru
    _
  // Predicated region
  $region22: #{critic_forward.1} parent=0 // pred_check
    _
  $region23: #{critic_forward.1} parent=0 // pred_check_branch
    %25 = sbr.rel (0) target = $region25
  $region24: #{critic_forward.1} parent=0 // pred_region
    _
  $region25: #{critic_forward.1} parent=0 // pred_fallthru
    _
  // Predicated region
  $region26: #{critic_forward.1} parent=0 // pred_check
    _
  $region27: #{critic_forward.1} parent=0 // pred_check_branch
    %27 = sbr.rel (0) target = $region29
  $region28: #{critic_forward.1} parent=0 // pred_region
    _
  $region29: #{critic_forward.1} parent=0 // pred_fallthru
    _
  %v29 = vld [vmem:[%s0] sm:$0xff]
  %v30 = vpack.c.bf16 %v29, %v29
  %v31 = vld [vmem:[%s1] sm:$0xf]
  %v32 = vld [vmem:[%s1 + $0x4] sm:$0xf]
  %v33 = vld [vmem:[%s1 + $0x8] sm:$0xf]
  %v34 = vld [vmem:[%s1 + $0xc] sm:$0xf]
  %v35 = vld [vmem:[%s1 + $0x10] sm:$0xf]
  %v36 = vld [vmem:[%s1 + $0x14] sm:$0xf]
  %v37 = vld [vmem:[%s2] sm:$0x1]
  %v39 = vlaneseq
  %v40 = vshrl.u32 %v39, 7
  %v41 = vsub.s32 0, %v40
  %v42 = vrot.slane %v37, %v41
  %v50 = vunpack.c.l.b16 %v31
  %v51 = vunpack.c.l.b16 %v32
  %v52 = vunpack.c.l.b16 %v33
  %v53 = vunpack.c.l.b16 %v34
  %v54 = vunpack.c.l.b16 %v35
  %v55 = vunpack.c.l.b16 %v36
  %v56 = vpack.c.b16 %v51, %v50
  %v57 = vpack.c.b16 %v53, %v52
  %v58 = vpack.c.b16 %v55, %v54
  %vm62 = vcmask 392192
  %v64 = vsel %vm62, %v30, 0
  %66 = vmatprep.subr.bf16.mxu0 0
  %67 = vmatpush1.bf16.msra.mxu0 %v56
  %68 = vmatprep.subr.bf16.mxu0 0
  %69 = vmatpush1.bf16.msra.mxu0 %v57
  %70 = vmatprep.subr.bf16.mxu0 0
  %71 = vmatpush1.bf16.msra.mxu0 %v58
  %72 = vmatprep.subr.bf16.mxu0 0
  %73 = vmatpush1.bf16.msra.mxu0 0
  %74 = vmatprep.subr.bf16.mxu0 0
  %75 = vmatpush1.bf16.msra.mxu0 0
  %76 = vmatprep.subr.bf16.mxu0 0
  %77 = vmatpush1.bf16.msra.mxu0 0
  %78 = vmatprep.subr.bf16.mxu0 0
  %79 = vmatpush1.bf16.msra.mxu0 0
  %80 = vmatprep.subr.bf16.mxu0 0
  %81 = vmatpush1.bf16.msra.mxu0 0
  %82 = vmatprep.subr.bf16.mxu0 0
  %83 = vmatpush1.bf16.msra.mxu0 0
  %84 = vmatprep.subr.bf16.mxu0 0
  %85 = vmatpush1.bf16.msra.mxu0 0
  %86 = vmatprep.subr.bf16.mxu0 0
  %87 = vmatpush1.bf16.msra.mxu0 0
  %88 = vmatprep.subr.bf16.mxu0 0
  %89 = vmatpush1.bf16.msra.mxu0 0
  %90 = vmatprep.subr.bf16.mxu0 0
  %91 = vmatpush1.bf16.msra.mxu0 0
  %92 = vmatprep.subr.bf16.mxu0 0
  %93 = vmatpush1.bf16.msra.mxu0 0
  %94 = vmatprep.subr.bf16.mxu0 0
  %95 = vmatpush1.bf16.msra.mxu0 0
  %96 = vmatprep.subr.bf16.mxu0 0
  %97 = vmatpush1.bf16.msra.mxu0 0
  %98 = vmatprep.mubr.bf16.mxu0 0
  %99 = vmatmul.mubr.bf16.gmra.mrb[0].mxu0 %v64
  %v100 = vpop.f32.mrb[0].mxu0
  %v101 = vadd.f32 %v42, %v100
  %v102 = vpop.f32.mrb[0].mxu0
  %v103 = vpop.f32.mrb[0].mxu0
  %v104 = vpop.f32.mrb[0].mxu0
  %105 = vdwg.mxu0
  %v106 = vmax.f32 %v101, 0.0
  %v107 = vpack.c.bf16 %v106, %v106
  %v108 = vld [vmem:[%s3] sm:$0xf]
  %v109 = vld [vmem:[%s3 + $0x4] sm:$0xf]
  %v110 = vld [vmem:[%s3 + $0x8] sm:$0xf]
  %v111 = vld [vmem:[%s3 + $0xc] sm:$0xf]
  %v112 = vld [vmem:[%s4] sm:$0x1]
  %v114 = vlaneseq
  %v115 = vshrl.u32 %v114, 7
  %v116 = vsub.s32 0, %v115
  %v117 = vrot.slane %v112, %v116
  %v123 = vunpack.c.l.b16 %v108
  %v124 = vunpack.c.l.b16 %v109
  %v125 = vunpack.c.l.b16 %v110
  %v126 = vunpack.c.l.b16 %v111
  %v127 = vpack.c.b16 %v124, %v123
  %v128 = vpack.c.b16 %v126, %v125
  %vm131 = vcmask 261120
  %v133 = vsel %vm131, %v107, 0
  %135 = vmatprep.subr.bf16.mxu0 0
  %136 = vmatpush1.bf16.msra.mxu0 %v127
  %137 = vmatprep.subr.bf16.mxu0 0
  %138 = vmatpush1.bf16.msra.mxu0 %v128
  %139 = vmatprep.subr.bf16.mxu0 0
  %140 = vmatpush1.bf16.msra.mxu0 0
  %141 = vmatprep.subr.bf16.mxu0 0
  %142 = vmatpush1.bf16.msra.mxu0 0
  %143 = vmatprep.subr.bf16.mxu0 0
  %144 = vmatpush1.bf16.msra.mxu0 0
  %145 = vmatprep.subr.bf16.mxu0 0
  %146 = vmatpush1.bf16.msra.mxu0 0
  %147 = vmatprep.subr.bf16.mxu0 0
  %148 = vmatpush1.bf16.msra.mxu0 0
  %149 = vmatprep.subr.bf16.mxu0 0
  %150 = vmatpush1.bf16.msra.mxu0 0
  %151 = vmatprep.subr.bf16.mxu0 0
  %152 = vmatpush1.bf16.msra.mxu0 0
  %153 = vmatprep.subr.bf16.mxu0 0
  %154 = vmatpush1.bf16.msra.mxu0 0
  %155 = vmatprep.subr.bf16.mxu0 0
  %156 = vmatpush1.bf16.msra.mxu0 0
  %157 = vmatprep.subr.bf16.mxu0 0
  %158 = vmatpush1.bf16.msra.mxu0 0
  %159 = vmatprep.subr.bf16.mxu0 0
  %160 = vmatpush1.bf16.msra.mxu0 0
  %161 = vmatprep.subr.bf16.mxu0 0
  %162 = vmatpush1.bf16.msra.mxu0 0
  %163 = vmatprep.subr.bf16.mxu0 0
  %164 = vmatpush1.bf16.msra.mxu0 0
  %165 = vmatprep.subr.bf16.mxu0 0
  %166 = vmatpush1.bf16.msra.mxu0 0
  %167 = vmatprep.mubr.bf16.mxu0 0
  %168 = vmatmul.mubr.bf16.gmra.mrb[0].mxu0 %v133
  %v169 = vpop.f32.mrb[0].mxu0
  %v170 = vadd.f32 %v117, %v169
  %v171 = vpop.f32.mrb[0].mxu0
  %v172 = vpop.f32.mrb[0].mxu0
  %v173 = vpop.f32.mrb[0].mxu0
  %174 = vdwg.mxu0
  %v175 = vmax.f32 %v170, 0.0
  %v176 = vld [vmem:[%s5] sm:$0x1]
  %v178 = vlaneseq
  %v179 = vshrl.u32 %v178, 7
  %v180 = vsub.s32 0, %v179
  %v181 = vrot.slane %v176, %v180
  %v183 = vmul.f32 %v175, %v181
  %v184 = vsel %vm131, %v183, 0.0
  %185 = vadd.xlane.f32.xlu0 %v184
  %v186 = vpop.xlane.xlu0 %185
  %v187 = vld [vmem:[#allocation2] sm:$0x1]
  %v189 = vlaneseq
  %v190 = vshrl.u32 %v189, 7
  %v191 = vsub.s32 0, %v190
  %v192 = vrot.slane %v187, %v191
  %v194 = vadd.f32 %v186, %v192
  %vm195 = vcmask 7168
  %196 = vst.msk [vmem:[%s7] sm:$0xff] %vm195, %v194
  // Predicated region
  $region30: #{critic_forward.1} parent=0 // pred_check
    _
  $region31: #{critic_forward.1} parent=0 // pred_check_branch
    %198 = sbr.rel (0) target = $region33
  $region32: #{critic_forward.1} parent=0 // pred_region
    _
  $region33: #{critic_forward.1} parent=0 // pred_fallthru
    _
  // Predicated region
  $region34: #{critic_forward.1} parent=0 // pred_check
    _
  $region35: #{critic_forward.1} parent=0 // pred_check_branch
    %200 = sbr.rel (0) target = $region37
  $region36: #{critic_forward.1} parent=0 // pred_region
    _
  $region37: #{critic_forward.1} parent=0 // pred_fallthru
    _

</llo_original>
